<compile_context>
chip_gen: v7x
topology: tpu7x:2x2x1
jax: 0.10.0
libtpu: 0.0.40
codegen_flags: <defaults>
</compile_context>

<pallas_src>
import math
import functools

import jax
import jax.numpy as jnp
from jax.experimental import pallas as pl
from jax.experimental.pallas import tpu as pltpu


# ---------------------------------------------------------------------------
# Static tap construction (plain Python -> compile-time constants).
# The module's jointly-normalized 2-D kernel factors exactly into per-axis
# normalized 1-D Gaussians: outer(taps_h, taps_w).
# ---------------------------------------------------------------------------
def gaussian_taps_1d(size, sigma):
    size = int(size)
    sigma = float(sigma)
    mean = (size - 1) / 2.0
    g = [
        math.exp(-(((i - mean) / sigma) ** 2) / 2.0) / (sigma * math.sqrt(2.0 * math.pi))
        for i in range(size)
    ]
    s = sum(g)
    return tuple(v / s for v in g)


def make_gaussian_kernel_2d(kernel_size, sigma, dtype=jnp.float32):
    """Reproduces GaussianSmoothing.__init__ weight construction (dim=2); used by the reference check."""
    ks = [kernel_size] * 2 if isinstance(kernel_size, (int, float)) else list(kernel_size)
    sg = [sigma] * 2 if isinstance(sigma, (int, float)) else list(sigma)
    grids = jnp.meshgrid(*[jnp.arange(int(s), dtype=dtype) for s in ks], indexing="ij")
    k = jnp.ones(tuple(int(s) for s in ks), dtype)
    for size, std, mg in zip(ks, sg, grids):
        mean = (size - 1) / 2.0
        k = k * (1.0 / (std * math.sqrt(2.0 * math.pi))
                 * jnp.exp(-(((mg - mean) / std) ** 2) / 2.0))
    return k / jnp.sum(k)


# ---------------------------------------------------------------------------
# Pallas kernel: separable depthwise Gaussian on one (nc_tile, H, W) block.
# ---------------------------------------------------------------------------
def _gauss_sep_kernel(x_ref, o_ref, *, wh, ww, Ho, Wo):
    # x_ref: (nc_tile, H, W) VMEM block; o_ref: (nc_tile, Ho, Wo) VMEM block.
    x = x_ref[...].astype(jnp.float32)      # accumulate in f32 (no-op for f32 inputs)
    H = x.shape[1]
    W = x.shape[2]

    # --- Horizontal pass (W / lane axis) ----------------------------------
    # roll(x, W - j, axis=2) places x[..., m + j] at lane m for m < Wo
    # (no wrap-around in the valid region), so lanes [0:Wo) of `h` hold the
    # horizontally-convolved values.  PyTorch conv2d is cross-correlation, so
    # taps are applied un-flipped (Gaussian is symmetric anyway).
    h = ww[0] * x
    for j in range(1, len(ww)):
        h = h + ww[j] * pltpu.roll(x, shift=W - j, axis=2)

    # --- Vertical pass (H / sublane axis) ---------------------------------
    out = wh[0] * h
    for i in range(1, len(wh)):
        out = out + wh[i] * pltpu.roll(h, shift=H - i, axis=1)

    # Final crop starts at offset 0 on both axes -> aligned, cheap slice.
    o_ref[...] = out[:, :Ho, :Wo].astype(o_ref.dtype)


# ---------------------------------------------------------------------------
# Wrapper: matches GaussianSmoothing.forward semantics for dim=2
# (NCHW input, depthwise groups=C, 'valid' padding, stride 1).
# ---------------------------------------------------------------------------
def gaussian_smoothing(x, kernel_size, sigma):
    if isinstance(kernel_size, (int, float)):
        kernel_size = [int(kernel_size)] * 2
    if isinstance(sigma, (int, float)):
        sigma = [float(sigma)] * 2
    Kh, Kw = int(kernel_size[0]), int(kernel_size[1])
    wh = gaussian_taps_1d(Kh, sigma[0])
    ww = gaussian_taps_1d(Kw, sigma[1])

    N, C, H, W = x.shape
    if H < Kh or W < Kw:
        raise ValueError(
            f"Input spatial dims ({H},{W}) must be >= kernel size ({Kh},{Kw}) for 'valid' conv.")
    Ho, Wo = H - Kh + 1, W - Kw + 1

    # Fuse N*C (depthwise => every channel image is independent, same taps)
    # and tile that fused axis.
    NC = N * C
    x3 = x.reshape(NC, H, W)

    # Per-block input byte budget: keep the double-buffered in+out working set
    # well under the v7x 64 MiB VMEM (and under default scoped limits elsewhere).
    bytes_per_image = H * W * x.dtype.itemsize
    budget = 2 * 1024 * 1024
    cap = max(1, min(NC, budget // max(1, bytes_per_image)))
    # Prefer >= ~4 grid steps so the BlockSpec pipeline can double-buffer and
    # ("parallel",) can shard steps across the two TensorCores on v7x.
    cap = min(cap, max(1, NC // 4))
    nc_tile = next(d for d in range(cap, 0, -1) if NC % d == 0)
    grid = (NC // nc_tile,)

    kernel = functools.partial(_gauss_sep_kernel, wh=wh, ww=ww, Ho=Ho, Wo=Wo)
    out3 = pl.pallas_call(
        kernel,
        out_shape=jax.ShapeDtypeStruct((NC, Ho, Wo), x.dtype),
        grid=grid,
        in_specs=[pl.BlockSpec((nc_tile, H, W), lambda b: (b, 0, 0))],
        out_specs=pl.BlockSpec((nc_tile, Ho, Wo), lambda b: (b, 0, 0)),
        compiler_params=pltpu.CompilerParams(
            dimension_semantics=("parallel",),
            vmem_limit_bytes=64 * 1024 * 1024,
        ),
    )(x3)
    return out3.reshape(N, C, Ho, Wo)


if __name__ == "__main__":
    # Small deterministic example consistent with the module's forward:
    # channels=4, kernel_size=3, sigma=1.0, dim=2, input NCHW = (2, 4, 16, 16).
    N, C, H, W = 2, 4, 16, 16
    kernel_size, sigma = 3, 1.0

    key = jax.random.PRNGKey(0)
    x = jax.random.normal(key, (N, C, H, W), dtype=jnp.float32)

    out = gaussian_smoothing(x, kernel_size, sigma)
    out = jax.block_until_ready(out)

    # Reference: plain-JAX depthwise conv with the module's 2-D weight
    # (same semantics as F.conv2d(input, weight, groups=C)).
    w2d = make_gaussian_kernel_2d(kernel_size, sigma)
    w4 = jnp.broadcast_to(w2d[None, None], (C, 1, kernel_size, kernel_size))
    ref = jax.lax.conv_general_dilated(
        x, w4, window_strides=(1, 1), padding="VALID",
        dimension_numbers=("NCHW", "OIHW", "NCHW"), feature_group_count=C)

    assert out.shape == (N, C, H - kernel_size + 1, W - kernel_size + 1)
    assert jnp.allclose(out, ref, atol=1e-5, rtol=1e-5)

    print("KERNEL_OK")
</pallas_src>

<mosaic_0001>
module attributes {stable_mosaic.version = 11 : i64} {
  func.func @_gauss_sep_kernel(%arg0: i32, %arg1: memref<2x16x16xf32, #tpu.memory_space<vmem>>, %arg2: memref<2x14x14xf32, #tpu.memory_space<vmem>>) attributes {dimension_semantics = [#tpu.dimension_semantics<parallel>], iteration_bounds = array<i64: 4>, scalar_prefetch = 0 : i64, scratch_operands = 0 : i64, tpu.core_type = #tpu.core_type<tc>, window_params = [{transform_indices = @transform_0, window_bounds = array<i64: 2, 16, 16>}, {transform_indices = @transform_1, window_bounds = array<i64: 2, 14, 14>}]} {
    %c0 = arith.constant 0 : index
    %c0_0 = arith.constant 0 : index
    %c0_1 = arith.constant 0 : index
    %0 = vector.load %arg1[%c0, %c0_0, %c0_1] : memref<2x16x16xf32, #tpu.memory_space<vmem>>, vector<2x16x16xf32>
    %cst = arith.constant 0.274068624 : f32
    %1 = vector.broadcast %cst : f32 to vector<2x16x16xf32>
    %2 = arith.mulf %1, %0 : vector<2x16x16xf32>
    %c15_i32 = arith.constant 15 : i32
    %3 = tpu.dynamic_rotate %0 by %c15_i32 dim 2 : vector<2x16x16xf32>, i32 -> vector<2x16x16xf32>
    %cst_2 = arith.constant 0.451862752 : f32
    %4 = vector.broadcast %cst_2 : f32 to vector<2x16x16xf32>
    %5 = arith.mulf %4, %3 : vector<2x16x16xf32>
    %6 = arith.addf %2, %5 : vector<2x16x16xf32>
    %c14_i32 = arith.constant 14 : i32
    %7 = tpu.dynamic_rotate %0 by %c14_i32 dim 2 : vector<2x16x16xf32>, i32 -> vector<2x16x16xf32>
    %cst_3 = arith.constant 0.274068624 : f32
    %8 = vector.broadcast %cst_3 : f32 to vector<2x16x16xf32>
    %9 = arith.mulf %8, %7 : vector<2x16x16xf32>
    %10 = arith.addf %6, %9 : vector<2x16x16xf32>
    %cst_4 = arith.constant 0.274068624 : f32
    %11 = vector.broadcast %cst_4 : f32 to vector<2x16x16xf32>
    %12 = arith.mulf %11, %10 : vector<2x16x16xf32>
    %c15_i32_5 = arith.constant 15 : i32
    %13 = tpu.dynamic_rotate %10 by %c15_i32_5 dim 1 : vector<2x16x16xf32>, i32 -> vector<2x16x16xf32>
    %cst_6 = arith.constant 0.451862752 : f32
    %14 = vector.broadcast %cst_6 : f32 to vector<2x16x16xf32>
    %15 = arith.mulf %14, %13 : vector<2x16x16xf32>
    %16 = arith.addf %12, %15 : vector<2x16x16xf32>
    %c14_i32_7 = arith.constant 14 : i32
    %17 = tpu.dynamic_rotate %10 by %c14_i32_7 dim 1 : vector<2x16x16xf32>, i32 -> vector<2x16x16xf32>
    %cst_8 = arith.constant 0.274068624 : f32
    %18 = vector.broadcast %cst_8 : f32 to vector<2x16x16xf32>
    %19 = arith.mulf %18, %17 : vector<2x16x16xf32>
    %20 = arith.addf %16, %19 : vector<2x16x16xf32>
    %21 = vector.extract_strided_slice %20 {offsets = [0, 0, 0], sizes = [2, 14, 14], strides = [1, 1, 1]} : vector<2x16x16xf32> to vector<2x14x14xf32>
    %c0_9 = arith.constant 0 : index
    %c0_10 = arith.constant 0 : index
    %c0_11 = arith.constant 0 : index
    %22 = vector.load %arg2[%c0_9, %c0_10, %c0_11] : memref<2x14x14xf32, #tpu.memory_space<vmem>>, vector<2x14x14xf32>
    tpu.vector_store %arg2[%c0_9, %c0_10, %c0_11], %21 {strides = array<i32>} : memref<2x14x14xf32, #tpu.memory_space<vmem>>, vector<2x14x14xf32>,
    return
  }
  func.func @transform_0(%arg0: i32) -> (i32, i32, i32) {
    %c0_i32 = arith.constant 0 : i32
    %c0_i32_0 = arith.constant 0 : i32
    %c0_i32_1 = arith.constant 0 : i32
    return %arg0, %c0_i32, %c0_i32_0 : i32, i32, i32
  }
  func.func @transform_1(%arg0: i32) -> (i32, i32, i32) {
    %c0_i32 = arith.constant 0 : i32
    %c0_i32_0 = arith.constant 0 : i32
    %c0_i32_1 = arith.constant 0 : i32
    return %arg0, %c0_i32, %c0_i32_0 : i32, i32, i32
  }
}

</mosaic_0001>

<llo_original>
// kernel: tpu_custom_call.1
$region0: #{tpu_custom_call.1}
  #allocation0 [shape = 'u32[]', space=smem, size = 0x4, offset = 0x4, fixed_abs, tag = 'smem constant byte address 0x4 - core index']
  #allocation1 [shape = 'u32[144,128]{1,0:T(1,128)}', space=vmem, size = 0x12000, scoped, tag = 'internal scratch']
  %s0 = inlined_call_operand.hbm [shape: f32[8,16,16], index: 0, kind: input, shape index: {}]
  %s1 = inlined_call_operand.hbm [shape: f32[8,14,14], index: 1, kind: output, shape index: {}]
  %s2 = sld [smem:[#allocation0]]
  $region41: #{tpu_custom_call.1} parent=0
    _
  %s4 = ssub.s32 1, %s2
  %s5 = scalar_select 0, %s4, %s2
  $region1: #{tpu_custom_call.1} parent=0
    #allocation2 [shape = 'u8[32768]{0}', space=vmem, size = 0x8000, scoped, tag = 'input window, operand 0']
    #allocation3 [shape = 's32[2]{0}', space=sflag, size = 0x8, scoped, tag = 'scoped memory for tpu_custom_call.1']
    #allocation4 [shape = 's32[2]{0}', space=sflag, size = 0x8, scoped, tag = 'scoped memory for tpu_custom_call.1']
    #allocation5 [shape = 'u8[32768]{0}', space=vmem, size = 0x8000, scoped, tag = 'output window, operand 0']
    %6 = vsyncpa [#allocation3], 0
    %s7 = scalar_lea.sflag [#allocation3], 1
    %8 = vsyncpa %s7, 0
    %9 = vsyncpa [#allocation4], 0
    %s10 = scalar_lea.sflag [#allocation4], 1
    %11 = vsyncpa %s10, 0
    loop: start=0, step=1, limit=6
    $region2: #{tpu_custom_call.1} parent=1 // loop_pre_header
      _
    $region3: #{tpu_custom_call.1} parent=1 // loop_header
      %s13 = sphi 0, %s17
      %p14 = scmp.ge.s32.totalorder %s13, 6
      %s23 = sphi 0, %s25
      %s26 = sphi 0, %s23
      %s27 = sphi 0, %s26
      %s43 = sphi 0, %s27
      %s49 = sphi 0, %s51
      %s52 = sphi 0, %s49
      %s53 = sphi 0, %s52
      %s69 = sphi 0, %s53
    $region4: #{tpu_custom_call.1} parent=1 // loop_header_branch
      %16 = sbr.rel (%p14) target = $region8
    $region5: #{tpu_custom_call.1} parent=1 // loop_body
      %s18 = ssub.s32 %s13, 1
      %s19 = ssub.s32 %s13, 2
      %s20 = sadd.s32 %s13, 1
      %s21 = ssub.s32 %s13, %s20
      %p22 = scmp.eq.s32.totalorder %s21, 0
      %s24 = sadd.s32 %s23, 1
      %s25 = scalar_select %p22, %s23, %s24
      %p28 = pneg %p22
      %p29 = scmp.eq.s32.totalorder %s13, 3
      %p30 = por %p28, %p29
      %p31 = scmp.ne.s32.totalorder %s23, %s26
      %p32 = scmp.eq.s32.totalorder %s13, 0
      %p33 = por %p31, %p32
      %p34 = scmp.ne.s32.totalorder %s23, %s26
      %p35 = scmp.eq.s32.totalorder %s18, 3
      %p36 = por %p34, %p35
      %p37 = scmp.ne.s32.totalorder %s26, %s27
      %p38 = scmp.eq.s32.totalorder %s18, 0
      %p39 = por %p37, %p38
      %p40 = scmp.ne.s32.totalorder %s26, %s27
      %p41 = scmp.eq.s32.totalorder %s19, 3
      %p42 = por %p40, %p41
      %p44 = scmp.ne.s32.totalorder %s27, %s43
      %p45 = scmp.eq.s32.totalorder %s19, 0
      %p46 = por %p44, %p45
      %s47 = ssub.s32 %s13, %s20
      %p48 = scmp.eq.s32.totalorder %s47, 0
      %s50 = sadd.s32 %s49, 1
      %s51 = scalar_select %p48, %s49, %s50
      %p54 = pneg %p48
      %p55 = scmp.eq.s32.totalorder %s13, 3
      %p56 = por %p54, %p55
      %p57 = scmp.ne.s32.totalorder %s49, %s52
      %p58 = scmp.eq.s32.totalorder %s13, 0
      %p59 = por %p57, %p58
      %p60 = scmp.ne.s32.totalorder %s49, %s52
      %p61 = scmp.eq.s32.totalorder %s18, 3
      %p62 = por %p60, %p61
      %p63 = scmp.ne.s32.totalorder %s52, %s53
      %p64 = scmp.eq.s32.totalorder %s18, 0
      %p65 = por %p63, %p64
      %p66 = scmp.ne.s32.totalorder %s52, %s53
      %p67 = scmp.eq.s32.totalorder %s19, 3
      %p68 = por %p66, %p67
      %p70 = scmp.ne.s32.totalorder %s53, %s69
      %p71 = scmp.eq.s32.totalorder %s19, 0
      %p72 = por %p70, %p71
      %p73 = scmp.le.s32.totalorder 1, %s13
      %p74 = scmp.lt.s32.totalorder %s13, 5
      %p75 = pnand %p73, %p74
      %p76 = pneg %p75
      // Predicated region
      $region9: #{tpu_custom_call.1} parent=5 // pred_check
        _
      $region10: #{tpu_custom_call.1} parent=5 // pred_check_branch
        %78 = sbr.rel (%p75) target = $region12
      $region11: #{tpu_custom_call.1} parent=5 // pred_region
        %s79 = ssub.s32 %s13, 1
      $region12: #{tpu_custom_call.1} parent=5 // pred_fallthru
        _
      %p80 = scmp.lt.s32.totalorder %s13, 4
      // Predicated region
      $region13: #{tpu_custom_call.1} parent=5 // pred_check
        %p81 = pneg %p80
      $region14: #{tpu_custom_call.1} parent=5 // pred_check_branch
        %83 = sbr.rel (%p81) target = $region16
      $region15: #{tpu_custom_call.1} parent=5 // pred_region
        // Predicated region
        $region17: #{tpu_custom_call.1} parent=15 // pred_check
          %p84 = pneg %p33
        $region18: #{tpu_custom_call.1} parent=15 // pred_check_branch
          %86 = sbr.rel (%p84) target = $region20
        $region19: #{tpu_custom_call.1} parent=15 // pred_region
          %s87 = sand.u32 %s23, 1
          %s88 = scalar_lea.sflag [#allocation3], %s87
          %s89 = sand.u32 %s23, 1
          %s90 = smul.addr %s89, 32
          %s91 = scalar_lea.vmem [#allocation2], %s90
          %s92 = smul.u32 2, %s13
          %s94 = ssub.s32 512, 512
          %95 = vsyncadd %s88, %s94
          %s96 = smul.addr %s92, 2
          %s97 = smul.addr %s96, 128
          %s98 = scalar_lea.hbm %s0, %s97
          %s99 = sshll.u32 %s91, 4
          %s100 = int_to_ptr.vmem [resolvable:$true] %s99
          %105 = dma.hbm_to_vmem [thread:$0]  %s98, 512, %s100, %s88, 128, 128, 8
        $region20: #{tpu_custom_call.1} parent=15 // pred_fallthru
          _
      $region16: #{tpu_custom_call.1} parent=5 // pred_fallthru
        _
      %p106 = scmp.le.s32.totalorder 1, %s13
      %p107 = scmp.lt.s32.totalorder %s13, 5
      %p108 = pnand %p106, %p107
      %p109 = pneg %p108
      // Predicated region
      $region21: #{tpu_custom_call.1} parent=5 // pred_check
        _
      $region22: #{tpu_custom_call.1} parent=5 // pred_check_branch
        %111 = sbr.rel (%p108) target = $region24
      $region23: #{tpu_custom_call.1} parent=5 // pred_region
        %s112 = ssub.s32 %s13, 1
        %s113 = sand.u32 %s26, 1
        %s114 = scalar_lea.sflag [#allocation3], %s113
        %s115 = sand.u32 %s26, 1
        %s116 = smul.addr %s115, 32
        %s117 = scalar_lea.vmem [#allocation2], %s116
        // Predicated region
        $region25: #{tpu_custom_call.1} parent=23 // pred_check
          %p118 = pneg %p39
        $region26: #{tpu_custom_call.1} parent=23 // pred_check_branch
          %120 = sbr.rel (%p118) target = $region28
        $region27: #{tpu_custom_call.1} parent=23 // pred_region
          %121 = dma.done %s114, 512
        $region28: #{tpu_custom_call.1} parent=23 // pred_fallthru
          _
        %s122 = sand.u32 %s26, 1
        %s123 = scalar_lea.sflag [#allocation3], %s122
        %s124 = sand.u32 %s26, 1
        %s125 = smul.addr %s124, 32
        %s126 = scalar_lea.vmem [#allocation2], %s125
        %p127 = pneg %p39
        %p128 = pneg %p36
        %p129 = pneg %p65
        %p130 = pneg %p62
        %s131 = sand.u32 %s52, 1
        %s132 = scalar_lea.sflag [#allocation4], %s131
        %s133 = sand.u32 %s52, 1
        %s134 = smul.addr %s133, 32
        %s135 = scalar_lea.vmem [#allocation5], %s134
        %s136 = smul.u32 2, %s18
        %s137 = smul.u32 2, %s18
        %v138 = vld [vmem:[%s117] sm:$0xff]
        %v139 = vld [vmem:[%s117 + $0x8] sm:$0xff]
        %v140 = vld [vmem:[%s117 + $0x10] sm:$0xff]
        %v141 = vld [vmem:[%s117 + $0x18] sm:$0xff]
        %v142 = vmul.f32 %v138, 0.27406862
        %v143 = vmul.f32 %v139, 0.27406862
        %v144 = vmul.f32 %v140, 0.27406862
        %v145 = vmul.f32 %v141, 0.27406862
        %vm146 = vcmask 1047680
        %147 = vrot.lane.b32.xlu0 %v138, 16
        %v148 = vpop.permute.xlu0 %147
        %v149 = vsel %vm146, %v148, %v138
        %150 = vrot.lane.b32.xlu0 %v139, 16
        %v151 = vpop.permute.xlu0 %150
        %v152 = vsel %vm146, %v151, %v139
        %153 = vrot.lane.b32.xlu0 %v140, 16
        %v154 = vpop.permute.xlu0 %153
        %v155 = vsel %vm146, %v154, %v140
        %156 = vrot.lane.b32.xlu0 %v141, 16
        %v157 = vpop.permute.xlu0 %156
        %v158 = vsel %vm146, %v157, %v141
        %159 = vrot.lane.b32.xlu0 %v149, 16
        %v160 = vpop.permute.xlu0 %159
        %161 = vrot.lane.b32.xlu0 %v152, 16
        %v162 = vpop.permute.xlu0 %161
        %163 = vrot.lane.b32.xlu0 %v155, 16
        %v164 = vpop.permute.xlu0 %163
        %165 = vrot.lane.b32.xlu0 %v158, 16
        %v166 = vpop.permute.xlu0 %165
        %v167 = vsel %vm146, %v160, %v138
        %v168 = vsel %vm146, %v162, %v139
        %v169 = vsel %vm146, %v164, %v140
        %v170 = vsel %vm146, %v166, %v141
        %v171 = vmul.f32 %v167, 0.45186275
        %v172 = vmul.f32 %v168, 0.45186275
        %v173 = vmul.f32 %v169, 0.45186275
        %v174 = vmul.f32 %v170, 0.45186275
        %179 = vrot.lane.b32.xlu0 %v171, 127
        %v180 = vpop.permute.xlu0 %179
        %181 = vrot.lane.b32.xlu0 %v172, 127
        %v182 = vpop.permute.xlu0 %181
        %183 = vrot.lane.b32.xlu0 %v173, 127
        %v184 = vpop.permute.xlu0 %183
        %185 = vrot.lane.b32.xlu0 %v174, 127
        %v186 = vpop.permute.xlu0 %185
        %v191 = vadd.f32 %v142, %v180
        %v192 = vadd.f32 %v143, %v182
        %v193 = vadd.f32 %v144, %v184
        %v194 = vadd.f32 %v145, %v186
        %v195 = vmul.f32 %v167, 0.27406862
        %v196 = vmul.f32 %v168, 0.27406862
        %v197 = vmul.f32 %v169, 0.27406862
        %v198 = vmul.f32 %v170, 0.27406862
        %203 = vrot.lane.b32.xlu0 %v195, 126
        %v204 = vpop.permute.xlu0 %203
        %205 = vrot.lane.b32.xlu0 %v196, 126
        %v206 = vpop.permute.xlu0 %205
        %207 = vrot.lane.b32.xlu0 %v197, 126
        %v208 = vpop.permute.xlu0 %207
        %209 = vrot.lane.b32.xlu0 %v198, 126
        %v210 = vpop.permute.xlu0 %209
        %v215 = vadd.f32 %v191, %v204
        %v216 = vadd.f32 %v192, %v206
        %v217 = vadd.f32 %v193, %v208
        %v218 = vadd.f32 %v194, %v210
        %v219 = vmul.f32 %v215, 0.27406862
        %v220 = vmul.f32 %v216, 0.27406862
        %v221 = vmul.f32 %v217, 0.27406862
        %v222 = vmul.f32 %v218, 0.27406862
        %v223 = vrot.slane %v215, 1
        %v224 = vrot.slane %v217, 1
        %v225 = vrot.slane %v216, 1
        %v226 = vrot.slane %v218, 1
        %v227 = vlaneseq
        %v228 = vshrl.u32 %v227, 7
        %vm229 = vcmp.lt.s32.totalorder %v228, 7
        %v230 = vsel %vm229, %v223, %v225
        %v231 = vsel %vm229, %v224, %v226
        %v232 = vsel %vm229, %v225, %v223
        %v233 = vsel %vm229, %v226, %v224
        %v234 = vmul.f32 %v230, 0.45186275
        %v235 = vmul.f32 %v232, 0.45186275
        %v236 = vmul.f32 %v231, 0.45186275
        %v237 = vmul.f32 %v233, 0.45186275
        %v238 = vadd.f32 %v219, %v234
        %v239 = vadd.f32 %v220, %v235
        %v240 = vadd.f32 %v221, %v236
        %v241 = vadd.f32 %v222, %v237
        %v242 = vrot.slane %v215, 2
        %v243 = vrot.slane %v217, 2
        %v244 = vrot.slane %v216, 2
        %v245 = vrot.slane %v218, 2
        %vm246 = vcmp.lt.s32.totalorder %v228, 6
        %v247 = vsel %vm246, %v242, %v244
        %v248 = vsel %vm246, %v243, %v245
        %v249 = vsel %vm246, %v244, %v242
        %v250 = vsel %vm246, %v245, %v243
        %v251 = vmul.f32 %v247, 0.27406862
        %v252 = vmul.f32 %v249, 0.27406862
        %v253 = vmul.f32 %v248, 0.27406862
        %v254 = vmul.f32 %v250, 0.27406862
        %v255 = vadd.f32 %v238, %v251
        %v256 = vadd.f32 %v239, %v252
        %v257 = vadd.f32 %v240, %v253
        %v258 = vadd.f32 %v241, %v254
        %vm259 = vcmask 113664
        %260 = vst.msk [vmem:[%s135] sm:$0xff] %vm259, %v255
        %vm261 = vcmask 111616
        %262 = vst.msk [vmem:[%s135 + $0x8] sm:$0x3f] %vm261, %v256
        %263 = vst.msk [vmem:[%s135 + $0x10] sm:$0xff] %vm259, %v257
        %264 = vst.msk [vmem:[%s135 + $0x18] sm:$0x3f] %vm261, %v258
        %s265 = sand.u32 %s52, 1
        %s266 = scalar_lea.sflag [#allocation4], %s265
        %s267 = sand.u32 %s52, 1
        %s268 = smul.addr %s267, 32
        %s269 = scalar_lea.vmem [#allocation5], %s268
        // Predicated region
        $region29: #{tpu_custom_call.1} parent=23 // pred_check
          %p270 = pneg %p62
        $region30: #{tpu_custom_call.1} parent=23 // pred_check_branch
          %272 = sbr.rel (%p270) target = $region32
        $region31: #{tpu_custom_call.1} parent=23 // pred_region
          %s273 = smul.u32 2, %s18
          %s275 = ssub.s32 512, 512
          %276 = vsyncadd %s266, %s275
          %s277 = smul.addr %s273, 2
          %s278 = smul.addr %s277, 128
          %s279 = scalar_lea.hbm %s1, %s278
          %s280 = sshll.u32 %s269, 4
          %s281 = int_to_ptr.vmem [resolvable:$true] %s280
          %286 = dma.vmem_to_hbm [thread:$0]  %s281, 512, %s279, %s266, 128, 128, 8
        $region32: #{tpu_custom_call.1} parent=23 // pred_fallthru
          _
      $region24: #{tpu_custom_call.1} parent=5 // pred_fallthru
        _
      %p287 = scmp.le.s32.totalorder 2, %s13
      // Predicated region
      $region33: #{tpu_custom_call.1} parent=5 // pred_check
        %p288 = pneg %p287
      $region34: #{tpu_custom_call.1} parent=5 // pred_check_branch
        %290 = sbr.rel (%p288) target = $region36
      $region35: #{tpu_custom_call.1} parent=5 // pred_region
        %s291 = ssub.s32 %s13, 2
        // Predicated region
        $region37: #{tpu_custom_call.1} parent=35 // pred_check
          %p292 = pneg %p68
        $region38: #{tpu_custom_call.1} parent=35 // pred_check_branch
          %294 = sbr.rel (%p292) target = $region40
        $region39: #{tpu_custom_call.1} parent=35 // pred_region
          %s295 = sand.u32 %s53, 1
          %s296 = scalar_lea.sflag [#allocation4], %s295
          %s297 = sand.u32 %s53, 1
          %s298 = smul.addr %s297, 32
          %s299 = scalar_lea.vmem [#allocation5], %s298
          %300 = dma.done %s296, 512
        $region40: #{tpu_custom_call.1} parent=35 // pred_fallthru
          _
      $region36: #{tpu_custom_call.1} parent=5 // pred_fallthru
        _
    $region6: #{tpu_custom_call.1} parent=1 // loop_footer
      %s17 = sadd.s32 1, %s13
    $region7: #{tpu_custom_call.1} parent=1 // loop_footer_branch
      %12 = sbr.rel target = $region3
    $region8: #{tpu_custom_call.1} parent=1 // loop_exit
      _
    %301 = vsyncpa [#allocation3], 1
    %s302 = scalar_lea.sflag [#allocation3], 1
    %303 = vsyncpa %s302, 1
    %304 = vsyncpa [#allocation4], 1
    %s305 = scalar_lea.sflag [#allocation4], 1
    %306 = vsyncpa %s305, 1

</llo_original>
